<compile_context>
chip_gen: v7x
topology: tpu7x:2x2x1
jax: 0.10.0
libtpu: 0.0.40
codegen_flags: <defaults>
</compile_context>

<pallas_src>
import functools

import jax
import jax.numpy as jnp
from jax.experimental import pallas as pl
from jax.experimental.pallas import tpu as pltpu


def _angle_loss_kernel(scale_ref, tcols_ref, cos_ref, psum_ref, *, gamma, n, tn):
    """One (TN, C) batch tile -> one partial sum of per-row focal losses."""
    scale = scale_ref[0, 0]                                # f32 scalar from SMEM
    tcols = tcols_ref[...].astype(jnp.float32)             # [TN, 2]: col0 = cos_t, col1 = phi_t
    cos = cos_ref[...].astype(jnp.float32)                 # [TN, C]

    cos_t = tcols[:, 0:1]                                  # [TN, 1] cos_theta[i, t_i]
    phi_t = tcols[:, 1:2]                                  # [TN, 1] phi_theta[i, t_i]
    delta = (phi_t - cos_t) * scale                        # (phi - cos) / (1 + lamb)
    out_t = cos_t + delta                                  # output[i, t_i] after margin mix

    # LSE decomposition of log_softmax(output)[i, t_i]:
    #   output == cos except the target column, so
    #   logsumexp(output) = log( sum_j exp(cos_j) - exp(cos_t) + exp(out_t) )
    # Stabilizer must cover both cos and out_t (out_t can exceed rowmax when phi > cos).
    row_max = jnp.max(cos, axis=-1, keepdims=True)         # [TN, 1]   (XLU)
    m = jnp.maximum(row_max, out_t)                        # [TN, 1]
    s = jnp.sum(jnp.exp(cos - m), axis=-1, keepdims=True)  # [TN, 1]   (EUP + XLU)
    s = s - jnp.exp(cos_t - m) + jnp.exp(out_t - m)
    logpt = out_t - m - jnp.log(s)                         # [TN, 1]

    # Focal weighting, specialized on the static gamma (no jnp.power for int gamma).
    if gamma == 0:
        loss = -logpt
    elif isinstance(gamma, int) and gamma > 0:
        one_minus_pt = 1.0 - jnp.exp(logpt)
        w = one_minus_pt
        for _ in range(gamma - 1):
            w = w * one_minus_pt
        loss = -w * logpt
    else:
        loss = -jnp.power(1.0 - jnp.exp(logpt), float(gamma)) * logpt

    # Mask ragged tail rows of the last tile (their block data is padding/garbage),
    # then emit a single per-tile partial sum.
    row_ids = pl.program_id(0) * tn + jax.lax.broadcasted_iota(jnp.int32, loss.shape, 0)
    loss = jnp.where(row_ids < n, loss, jnp.float32(0.0))
    psum_ref[...] = jnp.sum(loss, axis=0, keepdims=True)[None]   # (1, 1, 1)


def _choose_block_rows(n, c, itemsize, *, max_tile_bytes=4 * 1024 * 1024):
    """Batch-tile rows sized purely by bytes (~max_tile_bytes per cos tile).

    v5e: keep ~4 MiB (16 MiB scoped-VMEM default).  v6e: max_tile_bytes can be raised to
    ~8 MiB.  v7x: re-derive for 64 MiB physical VMEM and keep >= 2 grid steps so the
    "parallel" axis shards across both TensorCores.
    """
    if n <= 8:
        return n
    bytes_per_row = max(1, c * itemsize)
    rows = max(8, (max_tile_bytes // bytes_per_row) // 8 * 8)
    if rows >= n:
        # Whole batch would fit in one tile: split into >= 2 tiles so the parallel grid
        # can use both v7x TensorCores (harmless on single-TC v5e/v6e).
        rows = max(8, (((n + 1) // 2) + 7) // 8 * 8)
    return rows


def angle_loss(cos_theta, phi_theta, target, *, it=1, gamma=0,
               max_tile_bytes=4 * 1024 * 1024):
    """Forward pass of AngleLoss for one call (PyTorch's self.it == `it` after increment)."""
    n, c = cos_theta.shape
    lambda_min, lambda_max = 5.0, 1500.0
    lamb = max(lambda_min, lambda_max / (1.0 + 0.1 * it))
    # Runtime SMEM scalar -> kernel jaxpr does not change with `it`; compiled kernel is
    # reused across the whole lambda schedule.
    scale = jnp.full((1, 1), 1.0 / (1.0 + lamb), dtype=jnp.float32)

    tgt = target.reshape(n, 1).astype(jnp.int32)
    # Only the target-column entries of cos/phi are needed per row; pack them into one
    # (N, 2) array -> single narrow DMA stream into the kernel.
    # TODO(synk): verify in HLO that these 1-elem/row gathers don't lower to a full
    # one-hot contraction that re-reads the whole N x C matrices from HBM.
    cos_t = jnp.take_along_axis(cos_theta, tgt, axis=1)      # [N, 1]
    phi_t = jnp.take_along_axis(phi_theta, tgt, axis=1)      # [N, 1]
    tcols = jnp.concatenate([cos_t, phi_t], axis=1)          # [N, 2]

    tn = _choose_block_rows(n, c, jnp.dtype(cos_theta.dtype).itemsize,
                            max_tile_bytes=max_tile_bytes)
    num_tiles = (n + tn - 1) // tn

    kernel = functools.partial(_angle_loss_kernel, gamma=gamma, n=n, tn=tn)
    psums = pl.pallas_call(
        kernel,
        out_shape=jax.ShapeDtypeStruct((num_tiles, 1, 1), jnp.float32),
        grid=(num_tiles,),
        in_specs=[
            pl.BlockSpec(memory_space=pltpu.MemorySpace.SMEM),   # scale (1,1) scalar
            pl.BlockSpec((tn, 2), lambda i: (i, 0)),             # packed [cos_t, phi_t]
            pl.BlockSpec((tn, c), lambda i: (i, 0)),             # cos_theta tile
        ],
        out_specs=pl.BlockSpec((1, 1, 1), lambda i: (i, 0, 0)),  # per-tile partial sum
        compiler_params=pltpu.CompilerParams(
            dimension_semantics=("parallel",),
            vmem_limit_bytes=32 * 1024 * 1024,
        ),
    )(scale, tcols, cos_theta)

    # Tiny final reduction over num_tiles partial sums in plain JAX.
    return jnp.sum(psums) / n


def _angle_loss_ref(cos_theta, phi_theta, target, *, it=1, gamma=0):
    """Pure-JAX reference matching the PyTorch semantics."""
    n, c = cos_theta.shape
    lamb = max(5.0, 1500.0 / (1.0 + 0.1 * it))
    cos_theta = cos_theta.astype(jnp.float32)
    phi_theta = phi_theta.astype(jnp.float32)
    mask = jax.nn.one_hot(target, c, dtype=jnp.float32)
    output = cos_theta - mask * (cos_theta - phi_theta) / (1.0 + lamb)
    logp = jax.nn.log_softmax(output, axis=1)
    logpt = jnp.sum(logp * mask, axis=1)
    pt = jnp.exp(logpt)
    return jnp.mean(-((1.0 - pt) ** gamma) * logpt)


if __name__ == "__main__":
    key = jax.random.PRNGKey(0)
    k1, k2, k3, k4, k5, k6 = jax.random.split(key, 6)

    # Small single-tile case: gamma = 0 (module default), it = 1.
    N, C = 8, 16
    cos_theta = jax.random.normal(k1, (N, C), dtype=jnp.float32)
    phi_theta = jax.random.normal(k2, (N, C), dtype=jnp.float32)
    target = jax.random.randint(k3, (N,), 0, C, dtype=jnp.int32)

    loss = angle_loss(cos_theta, phi_theta, target, it=1, gamma=0)
    jax.block_until_ready(loss)
    ref = _angle_loss_ref(cos_theta, phi_theta, target, it=1, gamma=0)
    assert jnp.allclose(loss, ref, rtol=1e-5, atol=1e-5), (loss, ref)

    # Multi-tile + ragged last tile + integer focal gamma + different lambda (it=7).
    N2, C2 = 50, 24
    cos2 = jax.random.normal(k4, (N2, C2), dtype=jnp.float32)
    phi2 = jax.random.normal(k5, (N2, C2), dtype=jnp.float32)
    tgt2 = jax.random.randint(k6, (N2,), 0, C2, dtype=jnp.int32)

    loss2 = angle_loss(cos2, phi2, tgt2, it=7, gamma=2)
    jax.block_until_ready(loss2)
    ref2 = _angle_loss_ref(cos2, phi2, tgt2, it=7, gamma=2)
    assert jnp.allclose(loss2, ref2, rtol=1e-5, atol=1e-5), (loss2, ref2)

    print("KERNEL_OK")
</pallas_src>

<mosaic_0001>
module attributes {stable_mosaic.version = 11 : i64} {
  func.func @_angle_loss_kernel(%arg0: i32, %arg1: memref<1x1xf32, #tpu.memory_space<smem>>, %arg2: memref<8x2xf32, #tpu.memory_space<vmem>>, %arg3: memref<8x16xf32, #tpu.memory_space<vmem>>, %arg4: memref<1x1x1xf32, #tpu.memory_space<vmem>>) attributes {dimension_semantics = [#tpu.dimension_semantics<parallel>], iteration_bounds = array<i64: 1>, scalar_prefetch = 0 : i64, scratch_operands = 0 : i64, tpu.core_type = #tpu.core_type<tc>, window_params = [{transform_indices = @transform_0, window_bounds = array<i64: 1, 1>}, {transform_indices = @transform_1, window_bounds = array<i64: 8, 2>}, {transform_indices = @transform_2, window_bounds = array<i64: 8, 16>}, {transform_indices = @transform_3, window_bounds = array<i64: 1, 1, 1>}]} {
    %c0 = arith.constant 0 : index
    %c0_0 = arith.constant 0 : index
    %0 = memref.load %arg1[%c0, %c0_0] : memref<1x1xf32, #tpu.memory_space<smem>>
    %c0_1 = arith.constant 0 : index
    %c0_2 = arith.constant 0 : index
    %1 = vector.load %arg2[%c0_1, %c0_2] : memref<8x2xf32, #tpu.memory_space<vmem>>, vector<8x2xf32>
    %c0_3 = arith.constant 0 : index
    %c0_4 = arith.constant 0 : index
    %2 = vector.load %arg3[%c0_3, %c0_4] : memref<8x16xf32, #tpu.memory_space<vmem>>, vector<8x16xf32>
    %3 = vector.extract_strided_slice %1 {offsets = [0, 0], sizes = [8, 1], strides = [1, 1]} : vector<8x2xf32> to vector<8x1xf32>
    %4 = vector.extract_strided_slice %1 {offsets = [0, 1], sizes = [8, 1], strides = [1, 1]} : vector<8x2xf32> to vector<8x1xf32>
    %5 = arith.subf %4, %3 : vector<8x1xf32>
    %6 = vector.broadcast %0 : f32 to vector<8x1xf32>
    %7 = arith.mulf %5, %6 : vector<8x1xf32>
    %8 = arith.addf %3, %7 : vector<8x1xf32>
    %cst = arith.constant dense<0xFF800000> : vector<8xf32>
    %9 = vector.multi_reduction <maximumf>, %2, %cst [1] : vector<8x16xf32> to vector<8xf32>
    %10 = vector.shape_cast %9 : vector<8xf32> to vector<8x1xf32>
    %11 = arith.maximumf %10, %8 : vector<8x1xf32>
    %12 = vector.broadcast %11 : vector<8x1xf32> to vector<8x16xf32>
    %13 = arith.subf %2, %12 : vector<8x16xf32>
    %14 = math.exp %13 : vector<8x16xf32>
    %cst_5 = arith.constant dense<0.000000e+00> : vector<8xf32>
    %15 = vector.multi_reduction <add>, %14, %cst_5 [1] : vector<8x16xf32> to vector<8xf32>
    %16 = vector.shape_cast %15 : vector<8xf32> to vector<8x1xf32>
    %17 = arith.subf %3, %11 : vector<8x1xf32>
    %18 = math.exp %17 : vector<8x1xf32>
    %19 = arith.subf %16, %18 : vector<8x1xf32>
    %20 = arith.subf %8, %11 : vector<8x1xf32>
    %21 = math.exp %20 : vector<8x1xf32>
    %22 = arith.addf %19, %21 : vector<8x1xf32>
    %23 = arith.subf %8, %11 : vector<8x1xf32>
    %24 = math.log %22 : vector<8x1xf32>
    %25 = arith.subf %23, %24 : vector<8x1xf32>
    %cst_6 = arith.constant 0.000000e+00 : f32
    %26 = vector.broadcast %cst_6 : f32 to vector<8x1xf32>
    %27 = arith.subf %26, %25 : vector<8x1xf32>
    %c8_i32 = arith.constant 8 : i32
    %28 = arith.muli %arg0, %c8_i32 : i32
    %29 = tpu.iota {dimensions = array<i32: 0>} : vector<8x1xi32>
    %30 = vector.broadcast %28 : i32 to vector<8x1xi32>
    %31 = arith.addi %30, %29 : vector<8x1xi32>
    %c8_i32_7 = arith.constant 8 : i32
    %32 = vector.broadcast %c8_i32_7 : i32 to vector<8x1xi32>
    %33 = arith.cmpi slt, %31, %32 : vector<8x1xi32>
    %cst_8 = arith.constant 0.000000e+00 : f32
    %34 = vector.broadcast %cst_8 : f32 to vector<8x1xf32>
    %35 = arith.select %33, %27, %34 : vector<8x1xi1>, vector<8x1xf32>
    %cst_9 = arith.constant dense<0.000000e+00> : vector<1xf32>
    %36 = vector.multi_reduction <add>, %35, %cst_9 [0] : vector<8x1xf32> to vector<1xf32>
    %37 = vector.shape_cast %36 : vector<1xf32> to vector<1x1xf32>
    %38 = vector.shape_cast %37 : vector<1x1xf32> to vector<1x1x1xf32>
    %c0_10 = arith.constant 0 : index
    %c0_11 = arith.constant 0 : index
    %c0_12 = arith.constant 0 : index
    %39 = vector.load %arg4[%c0_10, %c0_11, %c0_12] : memref<1x1x1xf32, #tpu.memory_space<vmem>>, vector<1x1x1xf32>
    tpu.vector_store %arg4[%c0_10, %c0_11, %c0_12], %38 {strides = array<i32>} : memref<1x1x1xf32, #tpu.memory_space<vmem>>, vector<1x1x1xf32>,
    return
  }
  func.func @transform_0(%arg0: i32) -> (i32, i32) {
    %c0_i32 = arith.constant 0 : i32
    %c0_i32_0 = arith.constant 0 : i32
    %c0_i32_1 = arith.constant 0 : i32
    return %c0_i32, %c0_i32_0 : i32, i32
  }
  func.func @transform_1(%arg0: i32) -> (i32, i32) {
    %c0_i32 = arith.constant 0 : i32
    %c0_i32_0 = arith.constant 0 : i32
    return %arg0, %c0_i32 : i32, i32
  }
  func.func @transform_2(%arg0: i32) -> (i32, i32) {
    %c0_i32 = arith.constant 0 : i32
    %c0_i32_0 = arith.constant 0 : i32
    return %arg0, %c0_i32 : i32, i32
  }
  func.func @transform_3(%arg0: i32) -> (i32, i32, i32) {
    %c0_i32 = arith.constant 0 : i32
    %c0_i32_0 = arith.constant 0 : i32
    %c0_i32_1 = arith.constant 0 : i32
    return %arg0, %c0_i32, %c0_i32_0 : i32, i32, i32
  }
}

</mosaic_0001>

<llo_original>
// kernel: tpu_custom_call.1
$region0: #{tpu_custom_call.1}
  #allocation0 [shape = 'u32[]', space=smem, size = 0x4, offset = 0x4, fixed_abs, tag = 'smem constant byte address 0x4 - core index']
  #allocation1 [shape = 'u32[144,128]{1,0:T(1,128)}', space=vmem, size = 0x12000, scoped, tag = 'internal scratch']
  #allocation2 [shape = 'f32[1,1]{1,0:T(1,128)S(6)}', space=smem, size = 0x200, scoped, tag = 'scoped memory for tpu_custom_call.1']
  %s0 = inlined_call_operand.<no memory space> [shape: f32[1,1], index: 0, kind: input, shape index: {}]
  %s1 = inlined_call_operand.vmem [shape: f32[8,2], index: 1, kind: input, shape index: {}]
  %s2 = inlined_call_operand.vmem [shape: f32[8,16], index: 2, kind: input, shape index: {}]
  %s3 = inlined_call_operand.hbm [shape: f32[1,1,1], index: 3, kind: output, shape index: {}]
  %s4 = sld [smem:[#allocation0]]
  $region22: #{tpu_custom_call.1} parent=0
    _
  %s6 = ssub.s32 1, %s4
  %s7 = scalar_select 0, %s6, %s4
  %8 = sst [smem:[#allocation2]] %s0
  $region1: #{tpu_custom_call.1} parent=0
    #allocation3 [shape = 'u8[512]{0}', space=vmem, size = 0x400, scoped, tag = 'output window, operand 0, single buffered']
    #allocation4 [shape = 's32[1]{0}', space=sflag, size = 0x4, scoped, tag = 'scoped memory for tpu_custom_call.1']
    %9 = vsyncpa [#allocation4], 0
    // Predicated region
    $region2: #{tpu_custom_call.1} parent=1 // pred_check
      _
    $region3: #{tpu_custom_call.1} parent=1 // pred_check_branch
      %11 = sbr.rel (0) target = $region5
    $region4: #{tpu_custom_call.1} parent=1 // pred_region
      _
    $region5: #{tpu_custom_call.1} parent=1 // pred_fallthru
      _
    // Predicated region
    $region6: #{tpu_custom_call.1} parent=1 // pred_check
      _
    $region7: #{tpu_custom_call.1} parent=1 // pred_check_branch
      %13 = sbr.rel (0) target = $region9
    $region8: #{tpu_custom_call.1} parent=1 // pred_region
      _
    $region9: #{tpu_custom_call.1} parent=1 // pred_fallthru
      _
    // Predicated region
    $region10: #{tpu_custom_call.1} parent=1 // pred_check
      _
    $region11: #{tpu_custom_call.1} parent=1 // pred_check_branch
      %15 = sbr.rel (0) target = $region13
    $region12: #{tpu_custom_call.1} parent=1 // pred_region
      _
    $region13: #{tpu_custom_call.1} parent=1 // pred_fallthru
      _
    %s16 = sld [smem:[#allocation2]]
    %v17 = vld [vmem:[%s1] sm:$0xff]
    %v18 = vld [vmem:[%s2] sm:$0xff]
    %20 = vrot.lane.b32.xlu0 %v17, 1
    %v21 = vpop.permute.xlu0 %20
    %v23 = vsub.f32 %v17, %v21
    %v24 = vstv %s16
    %v25 = vmul.f32 %v23, %v24
    %27 = vrot.lane.b32.xlu0 %v25, 127
    %v28 = vpop.permute.xlu0 %27
    %v30 = vadd.f32 %v17, %v28
    %vm31 = vcmask 130048
    %v32 = vsel %vm31, %v18, -inf
    %33 = vmax.xlane.f32.xlu0 %v32
    %v34 = vpop.xlane.xlu0 %33
    %v35 = vmax.f32 %v34, %v30
    %37 = vset.pattern.permute.xlu0 0
    %38 = vperm.xlu0 %37, %v35
    %v39 = vpop.permute.xlu0 %38
    %v41 = vsub.f32 %v18, %v39
    %v42 = vmul.f32 %v41, 1.442695
    %v43 = vpow.pop %v42
    %v44 = vsel %vm31, %v43, 0.0
    %45 = vadd.xlane.f32.xlu0 %v44
    %v46 = vpop.xlane.xlu0 %45
    %v47 = vsub.f32 %v17, %v35
    %v48 = vmul.f32 %v47, 1.442695
    %v49 = vpow.pop %v48
    %v50 = vsub.f32 %v46, %v49
    %v51 = vsub.f32 %v30, %v35
    %v52 = vmul.f32 %v51, 1.442695
    %v53 = vpow.pop %v52
    %v54 = vadd.f32 %v50, %v53
    %v55 = vlog2.pop %v54
    %v56 = vmul.f32 %v55, 0.6931472
    %v57 = vsub.f32 %v51, %v56
    %v58 = vsub.f32 0.0, %v57
    %s59 = smul.u32 0, 8
    %v60 = vlaneseq
    %v61 = vshrl.u32 %v60, 7
    %v62 = vstv %s59
    %v63 = vadd.s32 %v62, %v61
    %vm64 = vcmp.lt.s32.totalorder %v63, 8
    %v65 = vsel %vm64, %v58, 0.0
    %vm66 = vcmask 7168
    %v67 = vsel %vm66, %v65, 0.0
    %v68 = vrot.slane %v67, 4
    %v69 = vadd.f32 %v67, %v68
    %v70 = vrot.slane %v69, 2
    %v71 = vadd.f32 %v69, %v70
    %v72 = vrot.slane %v71, 1
    %v73 = vadd.f32 %v71, %v72
    %vm74 = vcmask 0
    %75 = vst.msk [vmem:[#allocation3] sm:$0x1] %vm74, %v73
    // Predicated region
    $region14: #{tpu_custom_call.1} parent=1 // pred_check
      _
    $region15: #{tpu_custom_call.1} parent=1 // pred_check_branch
      %77 = sbr.rel (0) target = $region17
    $region16: #{tpu_custom_call.1} parent=1 // pred_region
      %s79 = ssub.s32 16, 16
      %80 = vsyncadd [#allocation4], %s79
      %s82 = sshll.u32 [#allocation3], 4
      %s83 = int_to_ptr.vmem [resolvable:$true] %s82
      %85 = dma.vmem_to_hbm [thread:$0]  %s83, 16, %s3, [#allocation4]
    $region17: #{tpu_custom_call.1} parent=1 // pred_fallthru
      _
    // Predicated region
    $region18: #{tpu_custom_call.1} parent=1 // pred_check
      _
    $region19: #{tpu_custom_call.1} parent=1 // pred_check_branch
      %87 = sbr.rel (0) target = $region21
    $region20: #{tpu_custom_call.1} parent=1 // pred_region
      %88 = dma.done [#allocation4], 16
    $region21: #{tpu_custom_call.1} parent=1 // pred_fallthru
      _
    %89 = vsyncpa [#allocation4], 1

</llo_original>
